<compile_context>
chip_gen: v6e
topology: v6e:2x2x1
jax: 0.10.0
libtpu: 0.0.40
codegen_flags: <defaults>
</compile_context>

<pallas_src>
import jax
import jax.numpy as jnp
from jax.experimental import pallas as pl
from jax.experimental.pallas import tpu as pltpu


def mdam_kernel(vis_ref, pos_ref, wqk_ref, bqk_ref, vo_ref, bo_ref, out_ref):
    # x = visual + positional                                     (TM, Din)
    x = vis_ref[...] + pos_ref[...]

    # fused query/key projection + 1/sqrt(H) scale (folded into Wqk, bqk)
    scores = jnp.dot(x, wqk_ref[...],
                     preferred_element_type=jnp.float32) + bqk_ref[...]      # (TM, Mp) f32

    # softmax over memory slots (padded slots carry bqk = -1e30 -> exp == 0)
    m = jnp.max(scores, axis=-1, keepdims=True)
    e = jnp.exp(scores - m)                                                  # (TM, Mp)
    s = jnp.sum(e, axis=-1, keepdims=True)                                   # (TM, 1)

    # memory read + (folded) multi-head concat + output projection;
    # normalize AFTER the dot so the scale touches (TM, Hp) not (TM, Mp).
    o = jnp.dot(e.astype(vo_ref.dtype), vo_ref[...],
                preferred_element_type=jnp.float32)                          # (TM, Hp)
    if out_ref.dtype == jnp.float32:
        o = o / s                                       # exact division, f32 path
    else:
        o = o * pl.reciprocal(s, approx=True)           # EUP reciprocal, bf16 path

    out_ref[...] = (o + bo_ref[...]).astype(out_ref.dtype)


def _pick_row_tile_and_vmem(bp, d_in, m_pad, h_pad, stream_bytes, block_rows):
    """Largest row tile whose double-buffered streams + resident constants +
    f32 temporaries fit a per-generation VMEM budget; also returns the
    explicit vmem_limit_bytes to request (~0.7x physical, capped)."""
    try:
        phys = int(pltpu.get_tpu_info().vmem_capacity_bytes)   # 128 MiB v5e/v6e, 64 MiB v7x/TC
    except Exception:
        phys = 64 << 20                                        # conservative fallback
    vmem_limit = max(32 << 20, min(int(phys * 0.7), 100 << 20))
    budget = int(vmem_limit * 0.85)                            # headroom for compiler scratch

    rows_cap = max(8, ((bp + 7) // 8) * 8)                     # never exceed the row count
    const_b = (d_in * m_pad + m_pad * h_pad) * stream_bytes + 4 * (m_pad + h_pad)

    candidates = (block_rows,) if block_rows is not None else (1024, 512, 256, 128, 64)
    tm = 64
    for cand in candidates:
        cand = max(8, (min(cand, rows_cap) // 8) * 8)
        streams = 2 * 2 * cand * d_in * stream_bytes           # vis+pos, double-buffered
        out_b = 2 * cand * h_pad * stream_bytes                # out, double-buffered
        scratch = 4 * cand * (d_in + m_pad + h_pad + 8)        # f32 temporaries
        tm = cand
        if const_b + streams + out_b + scratch <= budget:
            break
    return tm, vmem_limit


def memory_driven_alignment(visual, positional, params, *, num_heads, hidden_dim,
                            use_attention_bias=True, block_rows=None):
    b, n_patches, d_in = visual.shape
    H = hidden_dim
    bp = b * n_patches
    f32 = jnp.float32

    # ---------------- input-independent precompute (tiny, once per call) ----
    mem = params["memory"].astype(f32)
    k = mem @ params["wk_t"].astype(f32) + params["bk"].astype(f32)          # (M, H)
    v = mem @ params["wv_t"].astype(f32) + params["bv"].astype(f32)          # (M, H)
    scale = 1.0 / (H ** 0.5)
    wqk = (params["wq_t"].astype(f32) @ k.T) * scale                         # (Din, M)
    bqk = (params["bq"].astype(f32) @ k.T) * scale                           # (1, M)
    # NOTE: attention_bias is a scalar added uniformly to every logit; it
    # cancels exactly in softmax, so it is intentionally not applied here.
    # (`use_attention_bias` kept for API parity with the PyTorch module.)
    wo_sum = params["wo_t"].astype(f32).reshape(num_heads, H, H).sum(axis=0)  # (H, H)
    vo = v @ wo_sum                                                          # (M, H)
    bo = params["bo"].astype(f32)                                            # (1, H)
    M = wqk.shape[1]

    # ---------------- lane-dense padding of M / H to multiples of 128 -------
    m_pad = max(128, pl.cdiv(M, 128) * 128)
    h_pad = max(128, pl.cdiv(H, 128) * 128)
    if m_pad != M:
        wqk = jnp.pad(wqk, ((0, 0), (0, m_pad - M)))
        bqk = jnp.pad(bqk, ((0, 0), (0, m_pad - M)), constant_values=-1e30)  # exp -> 0
        vo = jnp.pad(vo, ((0, m_pad - M), (0, 0)))
    if h_pad != H:
        vo = jnp.pad(vo, ((0, 0), (0, h_pad - H)))
        bo = jnp.pad(bo, ((0, 0), (0, h_pad - H)))

    # streaming dtype follows the inputs: pass bf16 inputs to halve the
    # dominant HBM traffic; MXU accumulation stays f32 inside the kernel.
    compute_dtype = visual.dtype
    wqk = wqk.astype(compute_dtype)
    vo = vo.astype(compute_dtype)
    stream_bytes = jnp.dtype(compute_dtype).itemsize

    vis2 = visual.reshape(bp, d_in)      # contiguous reshape: no HBM copy
    pos2 = positional.reshape(bp, d_in)

    tm, vmem_limit = _pick_row_tile_and_vmem(bp, d_in, m_pad, h_pad,
                                             stream_bytes, block_rows)
    grid = (pl.cdiv(bp, tm),)            # ragged last tile -> masked writeback (no jnp.pad)

    def _const_spec(shape, single):
        idx = lambda i: (0,) * len(shape)
        if single:
            # constant index_map -> fetched once; don't reserve a 2nd VMEM copy
            return pl.BlockSpec(shape, idx, pipeline_mode=pl.Buffered(1))
        return pl.BlockSpec(shape, idx)

    def _run(single_buffer_consts):
        return pl.pallas_call(
            mdam_kernel,
            out_shape=jax.ShapeDtypeStruct((bp, h_pad), compute_dtype),
            grid_spec=pltpu.PrefetchScalarGridSpec(
                num_scalar_prefetch=0,
                grid=grid,
                in_specs=[
                    # streamed per-tile (double-buffered by Pallas)
                    pl.BlockSpec((tm, d_in), lambda i: (i, 0)),          # visual
                    pl.BlockSpec((tm, d_in), lambda i: (i, 0)),          # positional
                    # VMEM-resident constants
                    _const_spec((d_in, m_pad), single_buffer_consts),    # Wqk
                    _const_spec((1, m_pad), single_buffer_consts),       # bqk
                    _const_spec((m_pad, h_pad), single_buffer_consts),   # Vo
                    _const_spec((1, h_pad), single_buffer_consts),       # bo
                ],
                out_specs=pl.BlockSpec((tm, h_pad), lambda i: (i, 0)),
            ),
            compiler_params=pltpu.CompilerParams(
                # TODO(synk): on v7x, profile whether the single "parallel" axis
                # actually shards across both TensorCores; if one TC is idle,
                # switch to pltpu.CORE_PARALLEL.
                dimension_semantics=("parallel",),
                vmem_limit_bytes=vmem_limit,
            ),
        )(vis2, pos2, wqk, bqk, vo, bo)

    try:
        out = _run(True)
    except Exception:
        # pl.Buffered(1) unsupported on this jax/libtpu -> default double buffering
        out = _run(False)

    return out[:, :H].reshape(b, n_patches, H)


def reference_forward(visual, pos, params, *, num_heads, hidden_dim,
                      use_attention_bias=True):
    """Pure-JAX replica of the PyTorch module's forward (f32)."""
    x = (visual + pos).astype(jnp.float32)
    q = x @ params["wq_t"] + params["bq"]
    k = params["memory"] @ params["wk_t"] + params["bk"]
    v = params["memory"] @ params["wv_t"] + params["bv"]
    scores = q @ k.T / (hidden_dim ** 0.5)
    if use_attention_bias:
        scores = scores + params["attention_bias"][0]
    attn = jax.nn.softmax(scores, axis=-1)
    resp = attn @ v
    combined = jnp.concatenate([resp] * num_heads, axis=-1)
    return combined @ params["wo_t"] + params["bo"]


if __name__ == "__main__":
    # small shapes consistent with the module's forward
    batch, num_patches = 2, 8
    dim_in, dim_hidden = 64, 32
    memory_size, num_heads = 16, 3

    key = jax.random.PRNGKey(0)
    keys = jax.random.split(key, 12)

    params = {
        "memory": jax.random.normal(keys[0], (memory_size, dim_hidden), jnp.float32),
        # nn.Linear weights are (out, in); stored pre-transposed as (in, out)
        "wq_t": 0.05 * jax.random.normal(keys[1], (dim_in, dim_hidden), jnp.float32),
        "bq": 0.05 * jax.random.normal(keys[2], (1, dim_hidden), jnp.float32),
        "wk_t": 0.05 * jax.random.normal(keys[3], (dim_hidden, dim_hidden), jnp.float32),
        "bk": 0.05 * jax.random.normal(keys[4], (1, dim_hidden), jnp.float32),
        "wv_t": 0.05 * jax.random.normal(keys[5], (dim_hidden, dim_hidden), jnp.float32),
        "bv": 0.05 * jax.random.normal(keys[6], (1, dim_hidden), jnp.float32),
        "wo_t": 0.05 * jax.random.normal(keys[7], (num_heads * dim_hidden, dim_hidden), jnp.float32),
        "bo": 0.05 * jax.random.normal(keys[8], (1, dim_hidden), jnp.float32),
        "attention_bias": jax.random.normal(keys[9], (1,), jnp.float32),
    }

    visual = jax.random.normal(keys[10], (batch, num_patches, dim_in), jnp.float32)
    positional = jax.random.normal(keys[11], (batch, num_patches, dim_in), jnp.float32)

    ref = reference_forward(visual, positional, params,
                            num_heads=num_heads, hidden_dim=dim_hidden,
                            use_attention_bias=True)

    # f32 path: tight correctness check against the module reference
    out = memory_driven_alignment(visual, positional, params,
                                  num_heads=num_heads, hidden_dim=dim_hidden,
                                  use_attention_bias=True)
    out = jax.block_until_ready(out)
    assert out.shape == (batch, num_patches, dim_hidden)
    assert jnp.allclose(out, ref, atol=1e-3, rtol=1e-3), "f32 mismatch vs JAX reference"

    # bf16 streaming path (halves HBM traffic on the bandwidth-bound loop)
    out_bf16 = memory_driven_alignment(visual.astype(jnp.bfloat16),
                                       positional.astype(jnp.bfloat16), params,
                                       num_heads=num_heads, hidden_dim=dim_hidden,
                                       use_attention_bias=True)
    out_bf16 = jax.block_until_ready(out_bf16)
    assert out_bf16.dtype == jnp.bfloat16
    assert jnp.allclose(out_bf16.astype(jnp.float32), ref, atol=5e-2, rtol=5e-2), \
        "bf16 mismatch vs JAX reference"

    print("KERNEL_OK")
</pallas_src>

<mosaic_0001>
module attributes {stable_mosaic.version = 11 : i64} {
  func.func @mdam_kernel(%arg0: i32, %arg1: memref<16x64xf32, #tpu.memory_space<vmem>>, %arg2: memref<16x64xf32, #tpu.memory_space<vmem>>, %arg3: memref<64x128xf32, #tpu.memory_space<vmem>>, %arg4: memref<1x128xf32, #tpu.memory_space<vmem>>, %arg5: memref<128x128xf32, #tpu.memory_space<vmem>>, %arg6: memref<1x128xf32, #tpu.memory_space<vmem>>, %arg7: memref<16x128xf32, #tpu.memory_space<vmem>>) attributes {dimension_semantics = [#tpu.dimension_semantics<parallel>], iteration_bounds = array<i64: 1>, scalar_prefetch = 0 : i64, scratch_operands = 0 : i64, tpu.core_type = #tpu.core_type<tc>, window_params = [{transform_indices = @transform_0, window_bounds = array<i64: 16, 64>}, {transform_indices = @transform_1, window_bounds = array<i64: 16, 64>}, {pipeline_mode = #tpu.pipeline_mode<synchronous>, transform_indices = @transform_2, window_bounds = array<i64: 64, 128>}, {pipeline_mode = #tpu.pipeline_mode<synchronous>, transform_indices = @transform_3, window_bounds = array<i64: 1, 128>}, {pipeline_mode = #tpu.pipeline_mode<synchronous>, transform_indices = @transform_4, window_bounds = array<i64: 128, 128>}, {pipeline_mode = #tpu.pipeline_mode<synchronous>, transform_indices = @transform_5, window_bounds = array<i64: 1, 128>}, {transform_indices = @transform_6, window_bounds = array<i64: 16, 128>}]} {
    %c0 = arith.constant 0 : index
    %c0_0 = arith.constant 0 : index
    %0 = vector.load %arg1[%c0, %c0_0] : memref<16x64xf32, #tpu.memory_space<vmem>>, vector<16x64xf32>
    %c0_1 = arith.constant 0 : index
    %c0_2 = arith.constant 0 : index
    %1 = vector.load %arg2[%c0_1, %c0_2] : memref<16x64xf32, #tpu.memory_space<vmem>>, vector<16x64xf32>
    %2 = arith.addf %0, %1 : vector<16x64xf32>
    %c0_3 = arith.constant 0 : index
    %c0_4 = arith.constant 0 : index
    %3 = vector.load %arg3[%c0_3, %c0_4] : memref<64x128xf32, #tpu.memory_space<vmem>>, vector<64x128xf32>
    %cst = arith.constant dense<0.000000e+00> : vector<16x128xf32>
    %4 = tpu.matmul %2, %3, %cst {dimension_numbers = #tpu.dot_dimension_numbers<[1], [0], [0], [1], [0, 0, 1, 1], [], []>} : vector<16x64xf32>, vector<64x128xf32>, vector<16x128xf32> -> vector<16x128xf32>
    %c0_5 = arith.constant 0 : index
    %c0_6 = arith.constant 0 : index
    %5 = vector.load %arg4[%c0_5, %c0_6] : memref<1x128xf32, #tpu.memory_space<vmem>>, vector<1x128xf32>
    %6 = vector.broadcast %5 : vector<1x128xf32> to vector<16x128xf32>
    %7 = arith.addf %4, %6 : vector<16x128xf32>
    %cst_7 = arith.constant dense<0xFF800000> : vector<16xf32>
    %8 = vector.multi_reduction <maximumf>, %7, %cst_7 [1] : vector<16x128xf32> to vector<16xf32>
    %9 = vector.shape_cast %8 : vector<16xf32> to vector<16x1xf32>
    %10 = vector.broadcast %9 : vector<16x1xf32> to vector<16x128xf32>
    %11 = arith.subf %7, %10 : vector<16x128xf32>
    %12 = math.exp %11 : vector<16x128xf32>
    %cst_8 = arith.constant dense<0.000000e+00> : vector<16xf32>
    %13 = vector.multi_reduction <add>, %12, %cst_8 [1] : vector<16x128xf32> to vector<16xf32>
    %14 = vector.shape_cast %13 : vector<16xf32> to vector<16x1xf32>
    %c0_9 = arith.constant 0 : index
    %c0_10 = arith.constant 0 : index
    %15 = vector.load %arg5[%c0_9, %c0_10] : memref<128x128xf32, #tpu.memory_space<vmem>>, vector<128x128xf32>
    %cst_11 = arith.constant dense<0.000000e+00> : vector<16x128xf32>
    %16 = tpu.matmul %12, %15, %cst_11 {dimension_numbers = #tpu.dot_dimension_numbers<[1], [0], [0], [1], [0, 0, 1, 1], [], []>} : vector<16x128xf32>, vector<128x128xf32>, vector<16x128xf32> -> vector<16x128xf32>
    %17 = vector.broadcast %14 : vector<16x1xf32> to vector<16x128xf32>
    %18 = arith.divf %16, %17 : vector<16x128xf32>
    %c0_12 = arith.constant 0 : index
    %c0_13 = arith.constant 0 : index
    %19 = vector.load %arg6[%c0_12, %c0_13] : memref<1x128xf32, #tpu.memory_space<vmem>>, vector<1x128xf32>
    %20 = vector.broadcast %19 : vector<1x128xf32> to vector<16x128xf32>
    %21 = arith.addf %18, %20 : vector<16x128xf32>
    %c0_14 = arith.constant 0 : index
    %c0_15 = arith.constant 0 : index
    %22 = vector.load %arg7[%c0_14, %c0_15] : memref<16x128xf32, #tpu.memory_space<vmem>>, vector<16x128xf32>
    tpu.vector_store %arg7[%c0_14, %c0_15], %21 {strides = array<i32>} : memref<16x128xf32, #tpu.memory_space<vmem>>, vector<16x128xf32>,
    return
  }
  func.func @transform_0(%arg0: i32) -> (i32, i32) {
    %c0_i32 = arith.constant 0 : i32
    %c0_i32_0 = arith.constant 0 : i32
    return %arg0, %c0_i32 : i32, i32
  }
  func.func @transform_1(%arg0: i32) -> (i32, i32) {
    %c0_i32 = arith.constant 0 : i32
    %c0_i32_0 = arith.constant 0 : i32
    return %arg0, %c0_i32 : i32, i32
  }
  func.func @transform_2(%arg0: i32) -> (i32, i32) {
    %c0_i32 = arith.constant 0 : i32
    %c0_i32_0 = arith.constant 0 : i32
    %c0_i32_1 = arith.constant 0 : i32
    return %c0_i32, %c0_i32_0 : i32, i32
  }
  func.func @transform_3(%arg0: i32) -> (i32, i32) {
    %c0_i32 = arith.constant 0 : i32
    %c0_i32_0 = arith.constant 0 : i32
    %c0_i32_1 = arith.constant 0 : i32
    return %c0_i32, %c0_i32_0 : i32, i32
  }
  func.func @transform_4(%arg0: i32) -> (i32, i32) {
    %c0_i32 = arith.constant 0 : i32
    %c0_i32_0 = arith.constant 0 : i32
    %c0_i32_1 = arith.constant 0 : i32
    return %c0_i32, %c0_i32_0 : i32, i32
  }
  func.func @transform_5(%arg0: i32) -> (i32, i32) {
    %c0_i32 = arith.constant 0 : i32
    %c0_i32_0 = arith.constant 0 : i32
    %c0_i32_1 = arith.constant 0 : i32
    return %c0_i32, %c0_i32_0 : i32, i32
  }
  func.func @transform_6(%arg0: i32) -> (i32, i32) {
    %c0_i32 = arith.constant 0 : i32
    %c0_i32_0 = arith.constant 0 : i32
    return %arg0, %c0_i32 : i32, i32
  }
}

module attributes {stable_mosaic.version = 11 : i64} {
  func.func @mdam_kernel(%arg0: i32, %arg1: memref<16x64xf32, #tpu.memory_space<vmem>>, %arg2: memref<16x64xf32, #tpu.memory_space<vmem>>, %arg3: memref<64x128xf32, #tpu.memory_space<vmem>>, %arg4: memref<1x128xf32, #tpu.memory_space<vmem>>, %arg5: memref<128x128xf32, #tpu.memory_space<vmem>>, %arg6: memref<1x128xf32, #tpu.memory_space<vmem>>, %arg7: memref<16x128xf32, #tpu.memory_space<vmem>>) attributes {dimension_semantics = [#tpu.dimension_semantics<parallel>], iteration_bounds = array<i64: 1>, scalar_prefetch = 0 : i64, scratch_operands = 0 : i64, tpu.core_type = #tpu.core_type<tc>, window_params = [{transform_indices = @transform_0, window_bounds = array<i64: 16, 64>}, {transform_indices = @transform_1, window_bounds = array<i64: 16, 64>}, {pipeline_mode = #tpu.pipeline_mode<synchronous>, transform_indices = @transform_2, window_bounds = array<i64: 64, 128>}, {pipeline_mode = #tpu.pipeline_mode<synchronous>, transform_indices = @transform_3, window_bounds = array<i64: 1, 128>}, {pipeline_mode = #tpu.pipeline_mode<synchronous>, transform_indices = @transform_4, window_bounds = array<i64: 128, 128>}, {pipeline_mode = #tpu.pipeline_mode<synchronous>, transform_indices = @transform_5, window_bounds = array<i64: 1, 128>}, {transform_indices = @transform_6, window_bounds = array<i64: 16, 128>}]} {
    %c0 = arith.constant 0 : index
    %c0_0 = arith.constant 0 : index
    %0 = vector.load %arg1[%c0, %c0_0] : memref<16x64xf32, #tpu.memory_space<vmem>>, vector<16x64xf32>
    %c0_1 = arith.constant 0 : index
    %c0_2 = arith.constant 0 : index
    %1 = vector.load %arg2[%c0_1, %c0_2] : memref<16x64xf32, #tpu.memory_space<vmem>>, vector<16x64xf32>
    %2 = arith.addf %0, %1 : vector<16x64xf32>
    %c0_3 = arith.constant 0 : index
    %c0_4 = arith.constant 0 : index
    %3 = vector.load %arg3[%c0_3, %c0_4] : memref<64x128xf32, #tpu.memory_space<vmem>>, vector<64x128xf32>
    %cst = arith.constant dense<0.000000e+00> : vector<16x128xf32>
    %4 = tpu.matmul %2, %3, %cst {dimension_numbers = #tpu.dot_dimension_numbers<[1], [0], [0], [1], [0, 0, 1, 1], [], []>} : vector<16x64xf32>, vector<64x128xf32>, vector<16x128xf32> -> vector<16x128xf32>
    %c0_5 = arith.constant 0 : index
    %c0_6 = arith.constant 0 : index
    %5 = vector.load %arg4[%c0_5, %c0_6] : memref<1x128xf32, #tpu.memory_space<vmem>>, vector<1x128xf32>
    %6 = vector.broadcast %5 : vector<1x128xf32> to vector<16x128xf32>
    %7 = arith.addf %4, %6 : vector<16x128xf32>
    %cst_7 = arith.constant dense<0xFF800000> : vector<16xf32>
    %8 = vector.multi_reduction <maximumf>, %7, %cst_7 [1] : vector<16x128xf32> to vector<16xf32>
    %9 = vector.shape_cast %8 : vector<16xf32> to vector<16x1xf32>
    %10 = vector.broadcast %9 : vector<16x1xf32> to vector<16x128xf32>
    %11 = arith.subf %7, %10 : vector<16x128xf32>
    %12 = math.exp %11 : vector<16x128xf32>
    %cst_8 = arith.constant dense<0.000000e+00> : vector<16xf32>
    %13 = vector.multi_reduction <add>, %12, %cst_8 [1] : vector<16x128xf32> to vector<16xf32>
    %14 = vector.shape_cast %13 : vector<16xf32> to vector<16x1xf32>
    %c0_9 = arith.constant 0 : index
    %c0_10 = arith.constant 0 : index
    %15 = vector.load %arg5[%c0_9, %c0_10] : memref<128x128xf32, #tpu.memory_space<vmem>>, vector<128x128xf32>
    %cst_11 = arith.constant dense<0.000000e+00> : vector<16x128xf32>
    %16 = tpu.matmul %12, %15, %cst_11 {dimension_numbers = #tpu.dot_dimension_numbers<[1], [0], [0], [1], [0, 0, 1, 1], [], []>} : vector<16x128xf32>, vector<128x128xf32>, vector<16x128xf32> -> vector<16x128xf32>
    %17 = vector.broadcast %14 : vector<16x1xf32> to vector<16x128xf32>
    %18 = arith.divf %16, %17 : vector<16x128xf32>
    %c0_12 = arith.constant 0 : index
    %c0_13 = arith.constant 0 : index
    %19 = vector.load %arg6[%c0_12, %c0_13] : memref<1x128xf32, #tpu.memory_space<vmem>>, vector<1x128xf32>
    %20 = vector.broadcast %19 : vector<1x128xf32> to vector<16x128xf32>
    %21 = arith.addf %18, %20 : vector<16x128xf32>
    %c0_14 = arith.constant 0 : index
    %c0_15 = arith.constant 0 : index
    %22 = vector.load %arg7[%c0_14, %c0_15] : memref<16x128xf32, #tpu.memory_space<vmem>>, vector<16x128xf32>
    tpu.vector_store %arg7[%c0_14, %c0_15], %21 {strides = array<i32>} : memref<16x128xf32, #tpu.memory_space<vmem>>, vector<16x128xf32>,
    return
  }
  func.func @transform_0(%arg0: i32) -> (i32, i32) {
    %c0_i32 = arith.constant 0 : i32
    %c0_i32_0 = arith.constant 0 : i32
    return %arg0, %c0_i32 : i32, i32
  }
  func.func @transform_1(%arg0: i32) -> (i32, i32) {
    %c0_i32 = arith.constant 0 : i32
    %c0_i32_0 = arith.constant 0 : i32
    return %arg0, %c0_i32 : i32, i32
  }
  func.func @transform_2(%arg0: i32) -> (i32, i32) {
    %c0_i32 = arith.constant 0 : i32
    %c0_i32_0 = arith.constant 0 : i32
    %c0_i32_1 = arith.constant 0 : i32
    return %c0_i32, %c0_i32_0 : i32, i32
  }
  func.func @transform_3(%arg0: i32) -> (i32, i32) {
    %c0_i32 = arith.constant 0 : i32
    %c0_i32_0 = arith.constant 0 : i32
    %c0_i32_1 = arith.constant 0 : i32
    return %c0_i32, %c0_i32_0 : i32, i32
  }
  func.func @transform_4(%arg0: i32) -> (i32, i32) {
    %c0_i32 = arith.constant 0 : i32
    %c0_i32_0 = arith.constant 0 : i32
    %c0_i32_1 = arith.constant 0 : i32
    return %c0_i32, %c0_i32_0 : i32, i32
  }
  func.func @transform_5(%arg0: i32) -> (i32, i32) {
    %c0_i32 = arith.constant 0 : i32
    %c0_i32_0 = arith.constant 0 : i32
    %c0_i32_1 = arith.constant 0 : i32
    return %c0_i32, %c0_i32_0 : i32, i32
  }
  func.func @transform_6(%arg0: i32) -> (i32, i32) {
    %c0_i32 = arith.constant 0 : i32
    %c0_i32_0 = arith.constant 0 : i32
    return %arg0, %c0_i32 : i32, i32
  }
}

</mosaic_0001>

<llo_original>
// kernel: tpu_custom_call.1
$region0: #{tpu_custom_call.1}
  #allocation0 [shape = 'u32[]', space=smem, size = 0x4, offset = 0x4, fixed_abs, tag = 'smem constant byte address 0x4 - core index']
  #allocation1 [shape = 'u32[144,128]{1,0:T(1,128)}', space=vmem, size = 0x12000, scoped, tag = 'internal scratch']
  %s0 = inlined_call_operand.hbm [shape: f32[16,64], index: 0, kind: input, shape index: {}]
  %s1 = inlined_call_operand.hbm [shape: f32[16,64], index: 1, kind: input, shape index: {}]
  %s2 = inlined_call_operand.hbm [shape: f32[64,128], index: 2, kind: input, shape index: {}]
  %s3 = inlined_call_operand.vmem [shape: f32[1,128], index: 3, kind: input, shape index: {}]
  %s4 = inlined_call_operand.hbm [shape: f32[128,128], index: 4, kind: input, shape index: {}]
  %s5 = inlined_call_operand.vmem [shape: f32[1,128], index: 5, kind: input, shape index: {}]
  %s6 = inlined_call_operand.hbm [shape: f32[16,128], index: 6, kind: output, shape index: {}]
  %s7 = sld [smem:[#allocation0]]
  $region50: #{tpu_custom_call.1} parent=0
    _
  %s9 = ssub.s32 1, %s7
  %s10 = scalar_select 0, %s9, %s7
  $region1: #{tpu_custom_call.1} parent=0
    #allocation2 [shape = 'u8[8192]{0}', space=vmem, size = 0x2000, scoped, tag = 'input window, operand 0, single buffered']
    #allocation3 [shape = 's32[1]{0}', space=sflag, size = 0x4, scoped, tag = 'scoped memory for tpu_custom_call.1']
    #allocation4 [shape = 's32[1]{0}', space=sflag, size = 0x4, scoped, tag = 'scoped memory for tpu_custom_call.1']
    #allocation5 [shape = 'u8[8192]{0}', space=vmem, size = 0x2000, scoped, tag = 'input window, operand 1, single buffered']
    #allocation6 [shape = 's32[1]{0}', space=sflag, size = 0x4, scoped, tag = 'scoped memory for tpu_custom_call.1']
    #allocation7 [shape = 'u8[32768]{0}', space=vmem, size = 0x8000, scoped, tag = 'input window, operand 2, single buffered']
    #allocation8 [shape = 'u8[65536]{0}', space=vmem, size = 0x10000, scoped, tag = 'input window, operand 4, single buffered']
    #allocation9 [shape = 's32[1]{0}', space=sflag, size = 0x4, scoped, tag = 'scoped memory for tpu_custom_call.1']
    #allocation10 [shape = 'u8[8192]{0}', space=vmem, size = 0x2000, scoped, tag = 'output window, operand 0, single buffered']
    %11 = vsyncpa [#allocation3], 0
    %12 = vsyncpa [#allocation6], 0
    %13 = vsyncpa [#allocation9], 0
    %14 = vsyncpa [#allocation4], 0
    // Predicated region
    $region2: #{tpu_custom_call.1} parent=1 // pred_check
      _
    $region3: #{tpu_custom_call.1} parent=1 // pred_check_branch
      %16 = sbr.rel (0) target = $region5
    $region4: #{tpu_custom_call.1} parent=1 // pred_region
      %s18 = ssub.s32 256, 256
      %19 = vsyncadd [#allocation3], %s18
      %s20 = sshll.u32 [#allocation2], 4
      %s21 = int_to_ptr.vmem [resolvable:$true] %s20
      %26 = dma.hbm_to_vmem [thread:$0]  %s0, 256, %s21, [#allocation3], 128, 128, 8
    $region5: #{tpu_custom_call.1} parent=1 // pred_fallthru
      _
    // Predicated region
    $region6: #{tpu_custom_call.1} parent=1 // pred_check
      _
    $region7: #{tpu_custom_call.1} parent=1 // pred_check_branch
      %28 = sbr.rel (0) target = $region9
    $region8: #{tpu_custom_call.1} parent=1 // pred_region
      %s30 = ssub.s32 256, 256
      %31 = vsyncadd [#allocation6], %s30
      %s32 = sshll.u32 [#allocation5], 4
      %s33 = int_to_ptr.vmem [resolvable:$true] %s32
      %38 = dma.hbm_to_vmem [thread:$0]  %s1, 256, %s33, [#allocation6], 128, 128, 8
    $region9: #{tpu_custom_call.1} parent=1 // pred_fallthru
      _
    // Predicated region
    $region10: #{tpu_custom_call.1} parent=1 // pred_check
      _
    $region11: #{tpu_custom_call.1} parent=1 // pred_check_branch
      %40 = sbr.rel (0) target = $region13
    $region12: #{tpu_custom_call.1} parent=1 // pred_region
      %s42 = ssub.s32 1024, 1024
      %43 = vsyncadd [#allocation6], %s42
      %s44 = sshll.u32 [#allocation7], 4
      %s45 = int_to_ptr.vmem [resolvable:$true] %s44
      %50 = dma.hbm_to_vmem [thread:$0]  %s2, 1024, %s45, [#allocation6], 128, 128, 8
    $region13: #{tpu_custom_call.1} parent=1 // pred_fallthru
      _
    // Predicated region
    $region14: #{tpu_custom_call.1} parent=1 // pred_check
      _
    $region15: #{tpu_custom_call.1} parent=1 // pred_check_branch
      %52 = sbr.rel (0) target = $region17
    $region16: #{tpu_custom_call.1} parent=1 // pred_region
      _
    $region17: #{tpu_custom_call.1} parent=1 // pred_fallthru
      _
    // Predicated region
    $region18: #{tpu_custom_call.1} parent=1 // pred_check
      _
    $region19: #{tpu_custom_call.1} parent=1 // pred_check_branch
      %54 = sbr.rel (0) target = $region21
    $region20: #{tpu_custom_call.1} parent=1 // pred_region
      %s56 = ssub.s32 2048, 2048
      %57 = vsyncadd [#allocation9], %s56
      %s58 = sshll.u32 [#allocation8], 4
      %s59 = int_to_ptr.vmem [resolvable:$true] %s58
      %64 = dma.hbm_to_vmem [thread:$0]  %s4, 2048, %s59, [#allocation9], 128, 128, 8
    $region21: #{tpu_custom_call.1} parent=1 // pred_fallthru
      _
    // Predicated region
    $region22: #{tpu_custom_call.1} parent=1 // pred_check
      _
    $region23: #{tpu_custom_call.1} parent=1 // pred_check_branch
      %66 = sbr.rel (0) target = $region25
    $region24: #{tpu_custom_call.1} parent=1 // pred_region
      _
    $region25: #{tpu_custom_call.1} parent=1 // pred_fallthru
      _
    // Predicated region
    $region26: #{tpu_custom_call.1} parent=1 // pred_check
      _
    $region27: #{tpu_custom_call.1} parent=1 // pred_check_branch
      %68 = sbr.rel (0) target = $region29
    $region28: #{tpu_custom_call.1} parent=1 // pred_region
      %69 = dma.done [#allocation3], 256
    $region29: #{tpu_custom_call.1} parent=1 // pred_fallthru
      _
    // Predicated region
    $region30: #{tpu_custom_call.1} parent=1 // pred_check
      _
    $region31: #{tpu_custom_call.1} parent=1 // pred_check_branch
      %71 = sbr.rel (0) target = $region33
    $region32: #{tpu_custom_call.1} parent=1 // pred_region
      %72 = dma.done [#allocation6], 256
    $region33: #{tpu_custom_call.1} parent=1 // pred_fallthru
      _
    // Predicated region
    $region34: #{tpu_custom_call.1} parent=1 // pred_check
      _
    $region35: #{tpu_custom_call.1} parent=1 // pred_check_branch
      %74 = sbr.rel (0) target = $region37
    $region36: #{tpu_custom_call.1} parent=1 // pred_region
      %75 = dma.done [#allocation6], 1024
    $region37: #{tpu_custom_call.1} parent=1 // pred_fallthru
      _
    // Predicated region
    $region38: #{tpu_custom_call.1} parent=1 // pred_check
      _
    $region39: #{tpu_custom_call.1} parent=1 // pred_check_branch
      %77 = sbr.rel (0) target = $region41
    $region40: #{tpu_custom_call.1} parent=1 // pred_region
      %78 = dma.done [#allocation9], 2048
    $region41: #{tpu_custom_call.1} parent=1 // pred_fallthru
      _
    %v79 = vld [vmem:[#allocation2] sm:$0xff]
    %v80 = vld [vmem:[#allocation2 + $0x8] sm:$0xff]
    %v81 = vld [vmem:[#allocation5] sm:$0xff]
    %v82 = vld [vmem:[#allocation5 + $0x8] sm:$0xff]
    %v83 = vadd.f32 %v79, %v81
    %v84 = vadd.f32 %v80, %v82
    %v85 = vld [vmem:[#allocation7] sm:$0xff]
    %v86 = vld [vmem:[#allocation7 + $0x8] sm:$0xff]
    %v87 = vld [vmem:[#allocation7 + $0x10] sm:$0xff]
    %v88 = vld [vmem:[#allocation7 + $0x18] sm:$0xff]
    %v89 = vld [vmem:[#allocation7 + $0x20] sm:$0xff]
    %v90 = vld [vmem:[#allocation7 + $0x28] sm:$0xff]
    %v91 = vld [vmem:[#allocation7 + $0x30] sm:$0xff]
    %v92 = vld [vmem:[#allocation7 + $0x38] sm:$0xff]
    %v93 = vld [vmem:[%s3] sm:$0x1]
    %v95 = vlaneseq
    %v96 = vshrl.u32 %v95, 7
    %v97 = vsub.s32 0, %v96
    %v98 = vrot.slane %v93, %v97
    %vm100 = vcmask 523264
    %v102 = vsel %vm100, %v83, 0
    %v105 = vsel %vm100, %v84, 0
    %107 = vmatprep.subr.mxu0 0.0
    %108 = vmatpush1.msra.mxu0 0.0
    %109 = vmatprep.subr.mxu0 0.0
    %110 = vmatpush1.msra.mxu0 0.0
    %111 = vmatprep.subr.mxu0 0.0
    %112 = vmatpush1.msra.mxu0 0.0
    %113 = vmatprep.subr.mxu0 0.0
    %114 = vmatpush1.msra.mxu0 0.0
    %115 = vmatprep.subr.mxu0 0.0
    %116 = vmatpush1.msra.mxu0 0.0
    %117 = vmatprep.subr.mxu0 0.0
    %118 = vmatpush1.msra.mxu0 0.0
    %119 = vmatprep.subr.mxu0 0.0
    %120 = vmatpush1.msra.mxu0 0.0
    %121 = vmatprep.subr.mxu0 0.0
    %122 = vmatpush1.msra.mxu0 0.0
    %123 = vmatprep.subr.mxu0 0.0
    %124 = vmatpush1.msra.mxu0 %v92
    %125 = vmatprep.subr.mxu0 0.0
    %126 = vmatpush1.msra.mxu0 %v91
    %127 = vmatprep.subr.mxu0 0.0
    %128 = vmatpush1.msra.mxu0 %v90
    %129 = vmatprep.subr.mxu0 0.0
    %130 = vmatpush1.msra.mxu0 %v89
    %131 = vmatprep.subr.mxu0 0.0
    %132 = vmatpush1.msra.mxu0 %v88
    %133 = vmatprep.subr.mxu0 0.0
    %134 = vmatpush1.msra.mxu0 %v87
    %135 = vmatprep.subr.mxu0 0.0
    %136 = vmatpush1.msra.mxu0 %v86
    %137 = vmatprep.subr.mxu0 0.0
    %138 = vmatpush1.msra.mxu0 %v85
    %139 = vmatprep.subr.mxu0 0.0
    %140 = vmatpush2.msra.mxu0 0.0
    %141 = vmatprep.subr.mxu0 0.0
    %142 = vmatpush2.msra.mxu0 0.0
    %143 = vmatprep.subr.mxu0 0.0
    %144 = vmatpush2.msra.mxu0 0.0
    %145 = vmatprep.subr.mxu0 0.0
    %146 = vmatpush2.msra.mxu0 0.0
    %147 = vmatprep.subr.mxu0 0.0
    %148 = vmatpush2.msra.mxu0 0.0
    %149 = vmatprep.subr.mxu0 0.0
    %150 = vmatpush2.msra.mxu0 0.0
    %151 = vmatprep.subr.mxu0 0.0
    %152 = vmatpush2.msra.mxu0 0.0
    %153 = vmatprep.subr.mxu0 0.0
    %154 = vmatpush2.msra.mxu0 0.0
    %155 = vmatprep.subr.mxu0 0.0
    %156 = vmatpush2.msra.mxu0 0.0
    %157 = vmatprep.subr.mxu0 0.0
    %158 = vmatpush2.msra.mxu0 0.0
    %159 = vmatprep.subr.mxu0 0.0
    %160 = vmatpush2.msra.mxu0 0.0
    %161 = vmatprep.subr.mxu0 0.0
    %162 = vmatpush2.msra.mxu0 0.0
    %163 = vmatprep.subr.mxu0 0.0
    %164 = vmatpush2.msra.mxu0 0.0
    %165 = vmatprep.subr.mxu0 0.0
    %166 = vmatpush2.msra.mxu0 0.0
    %167 = vmatprep.subr.mxu0 0.0
    %168 = vmatpush2.msra.mxu0 0.0
    %169 = vmatprep.subr.mxu0 0.0
    %170 = vmatpush2.msra.mxu0 0.0
    %171 = vmatprep.mubr.f32.mxu0 0.0
    %172 = vmatmul.mubr.f32.gmra.mxu0 %v102
    %v173 = vpop.f32.mrf.mxu0
    %v174 = vadd.f32 %v98, %v173
    %v175 = vpop.f32.mrf.mxu0
    %176 = vmatprep.mubr.f32.mxu0 0.0
    %177 = vmatmul.mubr.f32.gmra.mxu0 %v105
    %v178 = vpop.f32.mrf.mxu0
    %v179 = vadd.f32 %v98, %v178
    %v180 = vpop.f32.mrf.mxu0
    %181 = vdwg.mxu0
    %182 = vmax.xlane.f32.xlu0 %v174
    %v183 = vpop.xlane.xlu0 %182
    %184 = vmax.xlane.f32.xlu0 %v179
    %v185 = vpop.xlane.xlu0 %184
    %v186 = vsub.f32 %v174, %v183
    %v187 = vsub.f32 %v179, %v185
    %v188 = vmul.f32 %v186, 1.442695
    %v189 = vpow.pop %v188
    %v190 = vmul.f32 %v187, 1.442695
    %v191 = vpow.pop %v190
    %192 = vadd.xlane.f32.xlu0 %v189
    %v193 = vpop.xlane.xlu0 %192
    %194 = vadd.xlane.f32.xlu0 %v191
    %v195 = vpop.xlane.xlu0 %194
    %v196 = vld [vmem:[#allocation8] sm:$0xff]
    %v197 = vld [vmem:[#allocation8 + $0x8] sm:$0xff]
    %v198 = vld [vmem:[#allocation8 + $0x10] sm:$0xff]
    %v199 = vld [vmem:[#allocation8 + $0x18] sm:$0xff]
    %v200 = vld [vmem:[#allocation8 + $0x20] sm:$0xff]
    %v201 = vld [vmem:[#allocation8 + $0x28] sm:$0xff]
    %v202 = vld [vmem:[#allocation8 + $0x30] sm:$0xff]
    %v203 = vld [vmem:[#allocation8 + $0x38] sm:$0xff]
    %v204 = vld [vmem:[#allocation8 + $0x40] sm:$0xff]
    %v205 = vld [vmem:[#allocation8 + $0x48] sm:$0xff]
    %v206 = vld [vmem:[#allocation8 + $0x50] sm:$0xff]
    %v207 = vld [vmem:[#allocation8 + $0x58] sm:$0xff]
    %v208 = vld [vmem:[#allocation8 + $0x60] sm:$0xff]
    %v209 = vld [vmem:[#allocation8 + $0x68] sm:$0xff]
    %v210 = vld [vmem:[#allocation8 + $0x70] sm:$0xff]
    %v211 = vld [vmem:[#allocation8 + $0x78] sm:$0xff]
    %212 = vmatprep.subr.mxu0 0.0
    %213 = vmatpush1.msra.mxu0 %v211
    %214 = vmatprep.subr.mxu0 0.0
    %215 = vmatpush1.msra.mxu0 %v210
    %216 = vmatprep.subr.mxu0 0.0
    %217 = vmatpush1.msra.mxu0 %v209
    %218 = vmatprep.subr.mxu0 0.0
    %219 = vmatpush1.msra.mxu0 %v208
    %220 = vmatprep.subr.mxu0 0.0
    %221 = vmatpush1.msra.mxu0 %v207
    %222 = vmatprep.subr.mxu0 0.0
    %223 = vmatpush1.msra.mxu0 %v206
    %224 = vmatprep.subr.mxu0 0.0
    %225 = vmatpush1.msra.mxu0 %v205
    %226 = vmatprep.subr.mxu0 0.0
    %227 = vmatpush1.msra.mxu0 %v204
    %228 = vmatprep.subr.mxu0 0.0
    %229 = vmatpush1.msra.mxu0 %v203
    %230 = vmatprep.subr.mxu0 0.0
    %231 = vmatpush1.msra.mxu0 %v202
    %232 = vmatprep.subr.mxu0 0.0
    %233 = vmatpush1.msra.mxu0 %v201
    %234 = vmatprep.subr.mxu0 0.0
    %235 = vmatpush1.msra.mxu0 %v200
    %236 = vmatprep.subr.mxu0 0.0
    %237 = vmatpush1.msra.mxu0 %v199
    %238 = vmatprep.subr.mxu0 0.0
    %239 = vmatpush1.msra.mxu0 %v198
    %240 = vmatprep.subr.mxu0 0.0
    %241 = vmatpush1.msra.mxu0 %v197
    %242 = vmatprep.subr.mxu0 0.0
    %243 = vmatpush1.msra.mxu0 %v196
    %244 = vmatprep.subr.mxu0 0.0
    %245 = vmatpush2.msra.mxu0 0.0
    %246 = vmatprep.subr.mxu0 0.0
    %247 = vmatpush2.msra.mxu0 0.0
    %248 = vmatprep.subr.mxu0 0.0
    %249 = vmatpush2.msra.mxu0 0.0
    %250 = vmatprep.subr.mxu0 0.0
    %251 = vmatpush2.msra.mxu0 0.0
    %252 = vmatprep.subr.mxu0 0.0
    %253 = vmatpush2.msra.mxu0 0.0
    %254 = vmatprep.subr.mxu0 0.0
    %255 = vmatpush2.msra.mxu0 0.0
    %256 = vmatprep.subr.mxu0 0.0
    %257 = vmatpush2.msra.mxu0 0.0
    %258 = vmatprep.subr.mxu0 0.0
    %259 = vmatpush2.msra.mxu0 0.0
    %260 = vmatprep.subr.mxu0 0.0
    %261 = vmatpush2.msra.mxu0 0.0
    %262 = vmatprep.subr.mxu0 0.0
    %263 = vmatpush2.msra.mxu0 0.0
    %264 = vmatprep.subr.mxu0 0.0
    %265 = vmatpush2.msra.mxu0 0.0
    %266 = vmatprep.subr.mxu0 0.0
    %267 = vmatpush2.msra.mxu0 0.0
    %268 = vmatprep.subr.mxu0 0.0
    %269 = vmatpush2.msra.mxu0 0.0
    %270 = vmatprep.subr.mxu0 0.0
    %271 = vmatpush2.msra.mxu0 0.0
    %272 = vmatprep.subr.mxu0 0.0
    %273 = vmatpush2.msra.mxu0 0.0
    %274 = vmatprep.subr.mxu0 0.0
    %275 = vmatpush2.msra.mxu0 0.0
    %276 = vmatprep.mubr.f32.mxu0 0.0
    %277 = vmatmul.mubr.f32.gmra.mxu0 %v189
    %v278 = vpop.f32.mrf.mxu0
    %v279 = vadd.f32 0.0, %v278
    %v280 = vpop.f32.mrf.mxu0
    %281 = vmatprep.mubr.f32.mxu0 0.0
    %282 = vmatmul.mubr.f32.gmra.mxu0 %v191
    %v283 = vpop.f32.mrf.mxu0
    %v284 = vadd.f32 0.0, %v283
    %v285 = vpop.f32.mrf.mxu0
    %286 = vdwg.mxu0
    %v287 = vrcp.pop %v193
    %v288 = vmul.f32 %v279, %v287
    %v289 = vrcp.pop %v195
    %v290 = vmul.f32 %v284, %v289
    %v291 = vld [vmem:[%s5] sm:$0x1]
    %v293 = vlaneseq
    %v294 = vshrl.u32 %v293, 7
    %v295 = vsub.s32 0, %v294
    %v296 = vrot.slane %v291, %v295
    %v298 = vadd.f32 %v288, %v296
    %v299 = vadd.f32 %v290, %v296
    %300 = vst [vmem:[#allocation10] sm:$0xff] %v298
    %301 = vst [vmem:[#allocation10 + $0x8] sm:$0xff] %v299
    // Predicated region
    $region42: #{tpu_custom_call.1} parent=1 // pred_check
      _
    $region43: #{tpu_custom_call.1} parent=1 // pred_check_branch
      %303 = sbr.rel (0) target = $region45
    $region44: #{tpu_custom_call.1} parent=1 // pred_region
      %s305 = ssub.s32 256, 256
      %306 = vsyncadd [#allocation4], %s305
      %s307 = sshll.u32 [#allocation10], 4
      %s308 = int_to_ptr.vmem [resolvable:$true] %s307
      %313 = dma.vmem_to_hbm [thread:$0]  %s308, 256, %s6, [#allocation4], 128, 128, 8
    $region45: #{tpu_custom_call.1} parent=1 // pred_fallthru
      _
    // Predicated region
    $region46: #{tpu_custom_call.1} parent=1 // pred_check
      _
    $region47: #{tpu_custom_call.1} parent=1 // pred_check_branch
      %315 = sbr.rel (0) target = $region49
    $region48: #{tpu_custom_call.1} parent=1 // pred_region
      %316 = dma.done [#allocation4], 256
    $region49: #{tpu_custom_call.1} parent=1 // pred_fallthru
      _
    %317 = vsyncpa [#allocation3], 1
    %318 = vsyncpa [#allocation6], 1
    %319 = vsyncpa [#allocation9], 1
    %320 = vsyncpa [#allocation4], 1

// kernel: tpu_custom_call.1
$region0: #{tpu_custom_call.1}
  #allocation0 [shape = 'u32[]', space=smem, size = 0x4, offset = 0x4, fixed_abs, tag = 'smem constant byte address 0x4 - core index']
  #allocation1 [shape = 'u32[144,128]{1,0:T(1,128)}', space=vmem, size = 0x12000, scoped, tag = 'internal scratch']
  %s0 = inlined_call_operand.hbm [shape: f32[16,64], index: 0, kind: input, shape index: {}]
  %s1 = inlined_call_operand.hbm [shape: f32[16,64], index: 1, kind: input, shape index: {}]
  %s2 = inlined_call_operand.hbm [shape: f32[64,128], index: 2, kind: input, shape index: {}]
  %s3 = inlined_call_operand.vmem [shape: f32[1,128], index: 3, kind: input, shape index: {}]
  %s4 = inlined_call_operand.hbm [shape: f32[128,128], index: 4, kind: input, shape index: {}]
  %s5 = inlined_call_operand.vmem [shape: f32[1,128], index: 5, kind: input, shape index: {}]
  %s6 = inlined_call_operand.hbm [shape: f32[16,128], index: 6, kind: output, shape index: {}]
  %s7 = sld [smem:[#allocation0]]
  $region50: #{tpu_custom_call.1} parent=0
    _
  %s9 = ssub.s32 1, %s7
  %s10 = scalar_select 0, %s9, %s7
  $region1: #{tpu_custom_call.1} parent=0
    #allocation2 [shape = 'u8[8192]{0}', space=vmem, size = 0x2000, scoped, tag = 'input window, operand 0, single buffered']
    #allocation3 [shape = 's32[1]{0}', space=sflag, size = 0x4, scoped, tag = 'scoped memory for tpu_custom_call.1']
    #allocation4 [shape = 's32[1]{0}', space=sflag, size = 0x4, scoped, tag = 'scoped memory for tpu_custom_call.1']
    #allocation5 [shape = 'u8[8192]{0}', space=vmem, size = 0x2000, scoped, tag = 'input window, operand 1, single buffered']
    #allocation6 [shape = 's32[1]{0}', space=sflag, size = 0x4, scoped, tag = 'scoped memory for tpu_custom_call.1']
    #allocation7 [shape = 'u8[32768]{0}', space=vmem, size = 0x8000, scoped, tag = 'input window, operand 2, single buffered']
    #allocation8 [shape = 'u8[65536]{0}', space=vmem, size = 0x10000, scoped, tag = 'input window, operand 4, single buffered']
    #allocation9 [shape = 's32[1]{0}', space=sflag, size = 0x4, scoped, tag = 'scoped memory for tpu_custom_call.1']
    #allocation10 [shape = 'u8[8192]{0}', space=vmem, size = 0x2000, scoped, tag = 'output window, operand 0, single buffered']
    %11 = vsyncpa [#allocation3], 0
    %12 = vsyncpa [#allocation6], 0
    %13 = vsyncpa [#allocation9], 0
    %14 = vsyncpa [#allocation4], 0
    // Predicated region
    $region2: #{tpu_custom_call.1} parent=1 // pred_check
      _
    $region3: #{tpu_custom_call.1} parent=1 // pred_check_branch
      %16 = sbr.rel (0) target = $region5
    $region4: #{tpu_custom_call.1} parent=1 // pred_region
      %s18 = ssub.s32 256, 256
      %19 = vsyncadd [#allocation3], %s18
      %s20 = sshll.u32 [#allocation2], 4
      %s21 = int_to_ptr.vmem [resolvable:$true] %s20
      %26 = dma.hbm_to_vmem [thread:$0]  %s0, 256, %s21, [#allocation3], 128, 128, 8
    $region5: #{tpu_custom_call.1} parent=1 // pred_fallthru
      _
    // Predicated region
    $region6: #{tpu_custom_call.1} parent=1 // pred_check
      _
    $region7: #{tpu_custom_call.1} parent=1 // pred_check_branch
      %28 = sbr.rel (0) target = $region9
    $region8: #{tpu_custom_call.1} parent=1 // pred_region
      %s30 = ssub.s32 256, 256
      %31 = vsyncadd [#allocation6], %s30
      %s32 = sshll.u32 [#allocation5], 4
      %s33 = int_to_ptr.vmem [resolvable:$true] %s32
      %38 = dma.hbm_to_vmem [thread:$0]  %s1, 256, %s33, [#allocation6], 128, 128, 8
    $region9: #{tpu_custom_call.1} parent=1 // pred_fallthru
      _
    // Predicated region
    $region10: #{tpu_custom_call.1} parent=1 // pred_check
      _
    $region11: #{tpu_custom_call.1} parent=1 // pred_check_branch
      %40 = sbr.rel (0) target = $region13
    $region12: #{tpu_custom_call.1} parent=1 // pred_region
      %s42 = ssub.s32 1024, 1024
      %43 = vsyncadd [#allocation6], %s42
      %s44 = sshll.u32 [#allocation7], 4
      %s45 = int_to_ptr.vmem [resolvable:$true] %s44
      %50 = dma.hbm_to_vmem [thread:$0]  %s2, 1024, %s45, [#allocation6], 128, 128, 8
    $region13: #{tpu_custom_call.1} parent=1 // pred_fallthru
      _
    // Predicated region
    $region14: #{tpu_custom_call.1} parent=1 // pred_check
      _
    $region15: #{tpu_custom_call.1} parent=1 // pred_check_branch
      %52 = sbr.rel (0) target = $region17
    $region16: #{tpu_custom_call.1} parent=1 // pred_region
      _
    $region17: #{tpu_custom_call.1} parent=1 // pred_fallthru
      _
    // Predicated region
    $region18: #{tpu_custom_call.1} parent=1 // pred_check
      _
    $region19: #{tpu_custom_call.1} parent=1 // pred_check_branch
      %54 = sbr.rel (0) target = $region21
    $region20: #{tpu_custom_call.1} parent=1 // pred_region
      %s56 = ssub.s32 2048, 2048
      %57 = vsyncadd [#allocation9], %s56
      %s58 = sshll.u32 [#allocation8], 4
      %s59 = int_to_ptr.vmem [resolvable:$true] %s58
      %64 = dma.hbm_to_vmem [thread:$0]  %s4, 2048, %s59, [#allocation9], 128, 128, 8
    $region21: #{tpu_custom_call.1} parent=1 // pred_fallthru
      _
    // Predicated region
    $region22: #{tpu_custom_call.1} parent=1 // pred_check
      _
    $region23: #{tpu_custom_call.1} parent=1 // pred_check_branch
      %66 = sbr.rel (0) target = $region25
    $region24: #{tpu_custom_call.1} parent=1 // pred_region
      _
    $region25: #{tpu_custom_call.1} parent=1 // pred_fallthru
      _
    // Predicated region
    $region26: #{tpu_custom_call.1} parent=1 // pred_check
      _
    $region27: #{tpu_custom_call.1} parent=1 // pred_check_branch
      %68 = sbr.rel (0) target = $region29
    $region28: #{tpu_custom_call.1} parent=1 // pred_region
      %69 = dma.done [#allocation3], 256
    $region29: #{tpu_custom_call.1} parent=1 // pred_fallthru
      _
    // Predicated region
    $region30: #{tpu_custom_call.1} parent=1 // pred_check
      _
    $region31: #{tpu_custom_call.1} parent=1 // pred_check_branch
      %71 = sbr.rel (0) target = $region33
    $region32: #{tpu_custom_call.1} parent=1 // pred_region
      %72 = dma.done [#allocation6], 256
    $region33: #{tpu_custom_call.1} parent=1 // pred_fallthru
      _
    // Predicated region
    $region34: #{tpu_custom_call.1} parent=1 // pred_check
      _
    $region35: #{tpu_custom_call.1} parent=1 // pred_check_branch
      %74 = sbr.rel (0) target = $region37
    $region36: #{tpu_custom_call.1} parent=1 // pred_region
      %75 = dma.done [#allocation6], 1024
    $region37: #{tpu_custom_call.1} parent=1 // pred_fallthru
      _
    // Predicated region
    $region38: #{tpu_custom_call.1} parent=1 // pred_check
      _
    $region39: #{tpu_custom_call.1} parent=1 // pred_check_branch
      %77 = sbr.rel (0) target = $region41
    $region40: #{tpu_custom_call.1} parent=1 // pred_region
      %78 = dma.done [#allocation9], 2048
    $region41: #{tpu_custom_call.1} parent=1 // pred_fallthru
      _
    %v79 = vld [vmem:[#allocation2] sm:$0xff]
    %v80 = vld [vmem:[#allocation2 + $0x8] sm:$0xff]
    %v81 = vld [vmem:[#allocation5] sm:$0xff]
    %v82 = vld [vmem:[#allocation5 + $0x8] sm:$0xff]
    %v83 = vadd.f32 %v79, %v81
    %v84 = vadd.f32 %v80, %v82
    %v85 = vld [vmem:[#allocation7] sm:$0xff]
    %v86 = vld [vmem:[#allocation7 + $0x8] sm:$0xff]
    %v87 = vld [vmem:[#allocation7 + $0x10] sm:$0xff]
    %v88 = vld [vmem:[#allocation7 + $0x18] sm:$0xff]
    %v89 = vld [vmem:[#allocation7 + $0x20] sm:$0xff]
    %v90 = vld [vmem:[#allocation7 + $0x28] sm:$0xff]
    %v91 = vld [vmem:[#allocation7 + $0x30] sm:$0xff]
    %v92 = vld [vmem:[#allocation7 + $0x38] sm:$0xff]
    %v93 = vld [vmem:[%s3] sm:$0x1]
    %v95 = vlaneseq
    %v96 = vshrl.u32 %v95, 7
    %v97 = vsub.s32 0, %v96
    %v98 = vrot.slane %v93, %v97
    %vm100 = vcmask 523264
    %v102 = vsel %vm100, %v83, 0
    %v105 = vsel %vm100, %v84, 0
    %107 = vmatprep.subr.mxu0 0.0
    %108 = vmatpush1.msra.mxu0 0.0
    %109 = vmatprep.subr.mxu0 0.0
    %110 = vmatpush1.msra.mxu0 0.0
    %111 = vmatprep.subr.mxu0 0.0
    %112 = vmatpush1.msra.mxu0 0.0
    %113 = vmatprep.subr.mxu0 0.0
    %114 = vmatpush1.msra.mxu0 0.0
    %115 = vmatprep.subr.mxu0 0.0
    %116 = vmatpush1.msra.mxu0 0.0
    %117 = vmatprep.subr.mxu0 0.0
    %118 = vmatpush1.msra.mxu0 0.0
    %119 = vmatprep.subr.mxu0 0.0
    %120 = vmatpush1.msra.mxu0 0.0
    %121 = vmatprep.subr.mxu0 0.0
    %122 = vmatpush1.msra.mxu0 0.0
    %123 = vmatprep.subr.mxu0 0.0
    %124 = vmatpush1.msra.mxu0 %v92
    %125 = vmatprep.subr.mxu0 0.0
    %126 = vmatpush1.msra.mxu0 %v91
    %127 = vmatprep.subr.mxu0 0.0
    %128 = vmatpush1.msra.mxu0 %v90
    %129 = vmatprep.subr.mxu0 0.0
    %130 = vmatpush1.msra.mxu0 %v89
    %131 = vmatprep.subr.mxu0 0.0
    %132 = vmatpush1.msra.mxu0 %v88
    %133 = vmatprep.subr.mxu0 0.0
    %134 = vmatpush1.msra.mxu0 %v87
    %135 = vmatprep.subr.mxu0 0.0
    %136 = vmatpush1.msra.mxu0 %v86
    %137 = vmatprep.subr.mxu0 0.0
    %138 = vmatpush1.msra.mxu0 %v85
    %139 = vmatprep.subr.mxu0 0.0
    %140 = vmatpush2.msra.mxu0 0.0
    %141 = vmatprep.subr.mxu0 0.0
    %142 = vmatpush2.msra.mxu0 0.0
    %143 = vmatprep.subr.mxu0 0.0
    %144 = vmatpush2.msra.mxu0 0.0
    %145 = vmatprep.subr.mxu0 0.0
    %146 = vmatpush2.msra.mxu0 0.0
    %147 = vmatprep.subr.mxu0 0.0
    %148 = vmatpush2.msra.mxu0 0.0
    %149 = vmatprep.subr.mxu0 0.0
    %150 = vmatpush2.msra.mxu0 0.0
    %151 = vmatprep.subr.mxu0 0.0
    %152 = vmatpush2.msra.mxu0 0.0
    %153 = vmatprep.subr.mxu0 0.0
    %154 = vmatpush2.msra.mxu0 0.0
    %155 = vmatprep.subr.mxu0 0.0
    %156 = vmatpush2.msra.mxu0 0.0
    %157 = vmatprep.subr.mxu0 0.0
    %158 = vmatpush2.msra.mxu0 0.0
    %159 = vmatprep.subr.mxu0 0.0
    %160 = vmatpush2.msra.mxu0 0.0
    %161 = vmatprep.subr.mxu0 0.0
    %162 = vmatpush2.msra.mxu0 0.0
    %163 = vmatprep.subr.mxu0 0.0
    %164 = vmatpush2.msra.mxu0 0.0
    %165 = vmatprep.subr.mxu0 0.0
    %166 = vmatpush2.msra.mxu0 0.0
    %167 = vmatprep.subr.mxu0 0.0
    %168 = vmatpush2.msra.mxu0 0.0
    %169 = vmatprep.subr.mxu0 0.0
    %170 = vmatpush2.msra.mxu0 0.0
    %171 = vmatprep.mubr.f32.mxu0 0.0
    %172 = vmatmul.mubr.f32.gmra.mxu0 %v102
    %v173 = vpop.f32.mrf.mxu0
    %v174 = vadd.f32 %v98, %v173
    %v175 = vpop.f32.mrf.mxu0
    %176 = vmatprep.mubr.f32.mxu0 0.0
    %177 = vmatmul.mubr.f32.gmra.mxu0 %v105
    %v178 = vpop.f32.mrf.mxu0
    %v179 = vadd.f32 %v98, %v178
    %v180 = vpop.f32.mrf.mxu0
    %181 = vdwg.mxu0
    %182 = vmax.xlane.f32.xlu0 %v174
    %v183 = vpop.xlane.xlu0 %182
    %184 = vmax.xlane.f32.xlu0 %v179
    %v185 = vpop.xlane.xlu0 %184
    %v186 = vsub.f32 %v174, %v183
    %v187 = vsub.f32 %v179, %v185
    %v188 = vmul.f32 %v186, 1.442695
    %v189 = vpow.pop %v188
    %v190 = vmul.f32 %v187, 1.442695
    %v191 = vpow.pop %v190
    %192 = vadd.xlane.f32.xlu0 %v189
    %v193 = vpop.xlane.xlu0 %192
    %194 = vadd.xlane.f32.xlu0 %v191
    %v195 = vpop.xlane.xlu0 %194
    %v196 = vld [vmem:[#allocation8] sm:$0xff]
    %v197 = vld [vmem:[#allocation8 + $0x8] sm:$0xff]
    %v198 = vld [vmem:[#allocation8 + $0x10] sm:$0xff]
    %v199 = vld [vmem:[#allocation8 + $0x18] sm:$0xff]
    %v200 = vld [vmem:[#allocation8 + $0x20] sm:$0xff]
    %v201 = vld [vmem:[#allocation8 + $0x28] sm:$0xff]
    %v202 = vld [vmem:[#allocation8 + $0x30] sm:$0xff]
    %v203 = vld [vmem:[#allocation8 + $0x38] sm:$0xff]
    %v204 = vld [vmem:[#allocation8 + $0x40] sm:$0xff]
    %v205 = vld [vmem:[#allocation8 + $0x48] sm:$0xff]
    %v206 = vld [vmem:[#allocation8 + $0x50] sm:$0xff]
    %v207 = vld [vmem:[#allocation8 + $0x58] sm:$0xff]
    %v208 = vld [vmem:[#allocation8 + $0x60] sm:$0xff]
    %v209 = vld [vmem:[#allocation8 + $0x68] sm:$0xff]
    %v210 = vld [vmem:[#allocation8 + $0x70] sm:$0xff]
    %v211 = vld [vmem:[#allocation8 + $0x78] sm:$0xff]
    %212 = vmatprep.subr.mxu0 0.0
    %213 = vmatpush1.msra.mxu0 %v211
    %214 = vmatprep.subr.mxu0 0.0
    %215 = vmatpush1.msra.mxu0 %v210
    %216 = vmatprep.subr.mxu0 0.0
    %217 = vmatpush1.msra.mxu0 %v209
    %218 = vmatprep.subr.mxu0 0.0
    %219 = vmatpush1.msra.mxu0 %v208
    %220 = vmatprep.subr.mxu0 0.0
    %221 = vmatpush1.msra.mxu0 %v207
    %222 = vmatprep.subr.mxu0 0.0
    %223 = vmatpush1.msra.mxu0 %v206
    %224 = vmatprep.subr.mxu0 0.0
    %225 = vmatpush1.msra.mxu0 %v205
    %226 = vmatprep.subr.mxu0 0.0
    %227 = vmatpush1.msra.mxu0 %v204
    %228 = vmatprep.subr.mxu0 0.0
    %229 = vmatpush1.msra.mxu0 %v203
    %230 = vmatprep.subr.mxu0 0.0
    %231 = vmatpush1.msra.mxu0 %v202
    %232 = vmatprep.subr.mxu0 0.0
    %233 = vmatpush1.msra.mxu0 %v201
    %234 = vmatprep.subr.mxu0 0.0
    %235 = vmatpush1.msra.mxu0 %v200
    %236 = vmatprep.subr.mxu0 0.0
    %237 = vmatpush1.msra.mxu0 %v199
    %238 = vmatprep.subr.mxu0 0.0
    %239 = vmatpush1.msra.mxu0 %v198
    %240 = vmatprep.subr.mxu0 0.0
    %241 = vmatpush1.msra.mxu0 %v197
    %242 = vmatprep.subr.mxu0 0.0
    %243 = vmatpush1.msra.mxu0 %v196
    %244 = vmatprep.subr.mxu0 0.0
    %245 = vmatpush2.msra.mxu0 0.0
    %246 = vmatprep.subr.mxu0 0.0
    %247 = vmatpush2.msra.mxu0 0.0
    %248 = vmatprep.subr.mxu0 0.0
    %249 = vmatpush2.msra.mxu0 0.0
    %250 = vmatprep.subr.mxu0 0.0
    %251 = vmatpush2.msra.mxu0 0.0
    %252 = vmatprep.subr.mxu0 0.0
    %253 = vmatpush2.msra.mxu0 0.0
    %254 = vmatprep.subr.mxu0 0.0
    %255 = vmatpush2.msra.mxu0 0.0
    %256 = vmatprep.subr.mxu0 0.0
    %257 = vmatpush2.msra.mxu0 0.0
    %258 = vmatprep.subr.mxu0 0.0
    %259 = vmatpush2.msra.mxu0 0.0
    %260 = vmatprep.subr.mxu0 0.0
    %261 = vmatpush2.msra.mxu0 0.0
    %262 = vmatprep.subr.mxu0 0.0
    %263 = vmatpush2.msra.mxu0 0.0
    %264 = vmatprep.subr.mxu0 0.0
    %265 = vmatpush2.msra.mxu0 0.0
    %266 = vmatprep.subr.mxu0 0.0
    %267 = vmatpush2.msra.mxu0 0.0
    %268 = vmatprep.subr.mxu0 0.0
    %269 = vmatpush2.msra.mxu0 0.0
    %270 = vmatprep.subr.mxu0 0.0
    %271 = vmatpush2.msra.mxu0 0.0
    %272 = vmatprep.subr.mxu0 0.0
    %273 = vmatpush2.msra.mxu0 0.0
    %274 = vmatprep.subr.mxu0 0.0
    %275 = vmatpush2.msra.mxu0 0.0
    %276 = vmatprep.mubr.f32.mxu0 0.0
    %277 = vmatmul.mubr.f32.gmra.mxu0 %v189
    %v278 = vpop.f32.mrf.mxu0
    %v279 = vadd.f32 0.0, %v278
    %v280 = vpop.f32.mrf.mxu0
    %281 = vmatprep.mubr.f32.mxu0 0.0
    %282 = vmatmul.mubr.f32.gmra.mxu0 %v191
    %v283 = vpop.f32.mrf.mxu0
    %v284 = vadd.f32 0.0, %v283
    %v285 = vpop.f32.mrf.mxu0
    %286 = vdwg.mxu0
    %v287 = vrcp.pop %v193
    %v288 = vmul.f32 %v279, %v287
    %v289 = vrcp.pop %v195
    %v290 = vmul.f32 %v284, %v289
    %v291 = vld [vmem:[%s5] sm:$0x1]
    %v293 = vlaneseq
    %v294 = vshrl.u32 %v293, 7
    %v295 = vsub.s32 0, %v294
    %v296 = vrot.slane %v291, %v295
    %v298 = vadd.f32 %v288, %v296
    %v299 = vadd.f32 %v290, %v296
    %300 = vst [vmem:[#allocation10] sm:$0xff] %v298
    %301 = vst [vmem:[#allocation10 + $0x8] sm:$0xff] %v299
    // Predicated region
    $region42: #{tpu_custom_call.1} parent=1 // pred_check
      _
    $region43: #{tpu_custom_call.1} parent=1 // pred_check_branch
      %303 = sbr.rel (0) target = $region45
    $region44: #{tpu_custom_call.1} parent=1 // pred_region
      %s305 = ssub.s32 256, 256
      %306 = vsyncadd [#allocation4], %s305
      %s307 = sshll.u32 [#allocation10], 4
      %s308 = int_to_ptr.vmem [resolvable:$true] %s307
      %313 = dma.vmem_to_hbm [thread:$0]  %s308, 256, %s6, [#allocation4], 128, 128, 8
    $region45: #{tpu_custom_call.1} parent=1 // pred_fallthru
      _
    // Predicated region
    $region46: #{tpu_custom_call.1} parent=1 // pred_check
      _
    $region47: #{tpu_custom_call.1} parent=1 // pred_check_branch
      %315 = sbr.rel (0) target = $region49
    $region48: #{tpu_custom_call.1} parent=1 // pred_region
      %316 = dma.done [#allocation4], 256
    $region49: #{tpu_custom_call.1} parent=1 // pred_fallthru
      _
    %317 = vsyncpa [#allocation3], 1
    %318 = vsyncpa [#allocation6], 1
    %319 = vsyncpa [#allocation9], 1
    %320 = vsyncpa [#allocation4], 1

</llo_original>
